<compile_context>
chip_gen: v5e
topology: v5e:2x2
jax: 0.10.0
libtpu: 0.0.40
codegen_flags: <defaults>
</compile_context>

<pallas_src>
import functools

import jax
import jax.numpy as jnp
from jax.experimental import pallas as pl
from jax.experimental.pallas import tpu as pltpu


def _bootstrap_kernel(out_ref, tgt_ref, part_ref, *, compute_self, batch, block_b):
    x = out_ref[...].astype(jnp.float32)   # (tb, C)
    t = tgt_ref[...].astype(jnp.float32)   # (tb, C)
    tb = x.shape[0]

    # Row-validity mask: the grid is cdiv(B, block_b); the last tile may hang
    # over the end of the batch.  Padded rows are NOT naturally zero (a zero
    # row still has lse = log(C)), so mask per-row terms explicitly.
    row_start = pl.program_id(0) * block_b
    row_idx = jax.lax.broadcasted_iota(jnp.int32, (tb, 1), 0) + row_start
    valid = row_idx < batch                          # (tb, 1)

    # numerically-stable log-softmax along the class (lane) dim
    m = jnp.max(x, axis=-1, keepdims=True)           # (tb, 1)
    e = jnp.exp(x - m)                                # single EUP exp over the tile
    z = jnp.sum(e, axis=-1, keepdims=True)            # (tb, 1)
    lse = jnp.log(z)                                  # (tb, 1)
    ls = x - m - lse                                   # log_softmax(x)

    # cross-entropy against soft targets (per-row, then mask, then reduce)
    ce_rows = -jnp.sum(ls * t, axis=-1, keepdims=True)           # (tb, 1)
    ce_part = jnp.sum(jnp.where(valid, ce_rows, 0.0))

    # gather(1, argmax(log_softmax)) per row == max_c log_softmax == -lse
    # (since max_c (x - m) == 0); avoids a cross-lane max reduction.
    hard_part = jnp.sum(jnp.where(valid, -lse, 0.0))

    if compute_self:
        # softmax(x) reusing e (no second exp); detach is a no-op in forward.
        p = e * pl.reciprocal(z)
        self_rows = -jnp.sum(ls * p, axis=-1, keepdims=True)     # (tb, 1)
        self_part = jnp.sum(jnp.where(valid, self_rows, 0.0))
    else:
        self_part = jnp.float32(0.0)

    # Pack the three scalars into row 0 / lanes 0..2 of this tile's (8, 128)
    # output block; everything else is zero so the wrapper can just sum.
    row = jax.lax.broadcasted_iota(jnp.int32, part_ref.shape, 0)
    lane = jax.lax.broadcasted_iota(jnp.int32, part_ref.shape, 1)
    vals = jnp.where((row == 0) & (lane == 0), ce_part,
           jnp.where((row == 0) & (lane == 1), hard_part,
           jnp.where((row == 0) & (lane == 2), self_part,
                     jnp.float32(0.0))))
    part_ref[...] = vals


def _vmem_capacity_bytes():
    try:
        return int(pltpu.get_tpu_info().vmem_capacity_bytes)
    except Exception:
        return 64 * 1024 * 1024   # conservative (v7x per-TC VMEM)


def _plan_block_b(B, C, itemsize, target_block_bytes=3 * 1024 * 1024):
    """Batch-tile rows: ~2-4 MiB per input block, >=2 grid steps when B allows."""
    bytes_per_row = max(1, C * itemsize)
    rows = max(8, target_block_bytes // bytes_per_row)
    rows = max(8, (rows // 8) * 8)                    # sublane-aligned

    padded_b = ((B + 7) // 8) * 8
    block_b = min(rows, padded_b)                      # no point exceeding padded B

    # Guarantee >= 2 grid steps (megacore sharding on v7x; DMA overlap elsewhere).
    if B > 8:
        half_up8 = max(8, (((B + 1) // 2 + 7) // 8) * 8)
        block_b = min(block_b, half_up8)

    return max(8, (block_b // 8) * 8)


def _vmem_limit_bytes(block_b, C, itemsize):
    """Budget inputs (double-buffered) + block-sized f32 temporaries + outputs."""
    phys = _vmem_capacity_bytes()
    in_bytes = 2 * 2 * block_b * C * itemsize          # 2 inputs x 2 pipeline buffers
    tmp_bytes = 6 * block_b * C * 4                     # x/e/ls/products in f32
    out_bytes = 2 * 8 * 128 * 4                          # partial block, double-buffered
    needed = in_bytes + tmp_bytes + out_bytes
    return int(min((phys * 3) // 4, max(2 * needed, 32 * 1024 * 1024)))


def bootstrapping_loss(outputs, targets, *, beta=0.95, alpha=0, block_b=None):
    """Pallas implementation of Bootstrapping(beta, alpha).forward(outputs, targets)."""
    B, C = outputs.shape
    itemsize = jnp.dtype(outputs.dtype).itemsize
    if block_b is None:
        block_b = _plan_block_b(B, C, itemsize)
    block_b = max(8, (block_b // 8) * 8)               # keep the (8,128) sublane rule
    num_tiles = pl.cdiv(B, block_b)
    vmem_limit = _vmem_limit_bytes(block_b, C, itemsize)

    in_spec = pl.BlockSpec((block_b, C), lambda i: (i, 0))
    # One (8, 128)-aligned partial block per grid step (lane-packed scalars).
    out_spec = pl.BlockSpec((8, 128), lambda i: (i, 0))

    kernel = functools.partial(_bootstrap_kernel,
                               compute_self=(alpha != 0),
                               batch=B,
                               block_b=block_b)

    partials = pl.pallas_call(
        kernel,
        out_shape=jax.ShapeDtypeStruct((8 * num_tiles, 128), jnp.float32),
        grid_spec=pltpu.PrefetchScalarGridSpec(
            num_scalar_prefetch=0,
            grid=(num_tiles,),
            in_specs=[in_spec, in_spec],
            out_specs=out_spec,
        ),
        compiler_params=pltpu.CompilerParams(
            dimension_semantics=("parallel",),
            vmem_limit_bytes=vmem_limit),
    )(outputs, targets)

    sums = jnp.sum(partials, axis=0)          # (128,) — only lanes 0..2 are live
    ce_mean = sums[0] / B
    hard_mean = sums[1] / B
    self_mean = sums[2] / B

    if alpha == 0:
        # hard bootstrapping
        return beta * ce_mean - (1.0 - beta) * hard_mean
    else:
        # soft bootstrapping
        return beta * ce_mean + (1.0 - beta) * self_mean


def _reference_loss(outputs, targets, beta=0.95, alpha=0):
    """Pure-JAX reference mirroring the PyTorch module exactly (f32 math)."""
    outputs = outputs.astype(jnp.float32)
    targets = targets.astype(jnp.float32)
    B = outputs.shape[0]
    ls = jax.nn.log_softmax(outputs, axis=-1)
    ce = -(ls * targets).sum() / B
    if alpha == 0:
        hard = jnp.take_along_axis(ls, jnp.argmax(ls, axis=1)[:, None], axis=1)
        return beta * ce - (1.0 - beta) * hard.sum() / B
    else:
        p = jax.nn.softmax(outputs, axis=1)
        self_ce = -(ls * p).sum() / B
        return beta * ce + (1.0 - beta) * self_ce


if __name__ == "__main__":
    key = jax.random.PRNGKey(0)
    k1, k2, k3, k4 = jax.random.split(key, 4)

    B, C = 16, 32
    outputs = jax.random.normal(k1, (B, C), dtype=jnp.float32) * 2.0
    # soft targets (rows sum to 1), like label-smoothed / soft labels
    targets = jax.nn.softmax(jax.random.normal(k2, (B, C), dtype=jnp.float32), axis=-1)

    # default module config: beta=0.95, alpha=0 (hard bootstrapping branch);
    # planner forces >= 2 grid steps here (block_b = 8, 2 tiles).
    loss = bootstrapping_loss(outputs, targets, beta=0.95, alpha=0)
    loss = jax.block_until_ready(loss)
    ref = _reference_loss(outputs, targets, beta=0.95, alpha=0)
    assert jnp.allclose(loss, ref, rtol=1e-5, atol=1e-5), (loss, ref)

    # alpha != 0 (soft bootstrapping) branch
    loss_soft = bootstrapping_loss(outputs, targets, beta=0.95, alpha=1)
    loss_soft = jax.block_until_ready(loss_soft)
    ref_soft = _reference_loss(outputs, targets, beta=0.95, alpha=1)
    assert jnp.allclose(loss_soft, ref_soft, rtol=1e-5, atol=1e-5), (loss_soft, ref_soft)

    # ragged batch (B not a multiple of the tile): exercises cdiv grid + row masking
    B2 = 20
    outputs2 = jax.random.normal(k3, (B2, C), dtype=jnp.float32) * 2.0
    targets2 = jax.nn.softmax(jax.random.normal(k4, (B2, C), dtype=jnp.float32), axis=-1)
    loss2 = jax.block_until_ready(bootstrapping_loss(outputs2, targets2, beta=0.95, alpha=0))
    ref2 = _reference_loss(outputs2, targets2, beta=0.95, alpha=0)
    assert jnp.allclose(loss2, ref2, rtol=1e-5, atol=1e-5), (loss2, ref2)
    loss2s = jax.block_until_ready(bootstrapping_loss(outputs2, targets2, beta=0.95, alpha=1))
    ref2s = _reference_loss(outputs2, targets2, beta=0.95, alpha=1)
    assert jnp.allclose(loss2s, ref2s, rtol=1e-5, atol=1e-5), (loss2s, ref2s)

    # bf16 inputs (halves HBM traffic; kernel math stays f32)
    out_bf = outputs.astype(jnp.bfloat16)
    tgt_bf = targets.astype(jnp.bfloat16)
    loss_bf = jax.block_until_ready(bootstrapping_loss(out_bf, tgt_bf, beta=0.95, alpha=0))
    ref_bf = _reference_loss(out_bf, tgt_bf, beta=0.95, alpha=0)
    assert jnp.allclose(loss_bf, ref_bf, rtol=2e-2, atol=1e-3), (loss_bf, ref_bf)

    # explicit tiny tile override (forces several tiles through the same path)
    loss_mt = jax.block_until_ready(
        bootstrapping_loss(outputs, targets, beta=0.95, alpha=0, block_b=8))
    assert jnp.allclose(loss_mt, ref, rtol=1e-5, atol=1e-5), (loss_mt, ref)

    print("KERNEL_OK")
</pallas_src>

<mosaic_0001>
module attributes {stable_mosaic.version = 11 : i64} {
  func.func @_bootstrap_kernel(%arg0: i32, %arg1: memref<8x32xf32, #tpu.memory_space<vmem>>, %arg2: memref<8x32xf32, #tpu.memory_space<vmem>>, %arg3: memref<8x128xf32, #tpu.memory_space<vmem>>) attributes {dimension_semantics = [#tpu.dimension_semantics<parallel>], iteration_bounds = array<i64: 2>, scalar_prefetch = 0 : i64, scratch_operands = 0 : i64, tpu.core_type = #tpu.core_type<tc>, window_params = [{transform_indices = @transform_0, window_bounds = array<i64: 8, 32>}, {transform_indices = @transform_1, window_bounds = array<i64: 8, 32>}, {transform_indices = @transform_2, window_bounds = array<i64: 8, 128>}]} {
    %c0 = arith.constant 0 : index
    %c0_0 = arith.constant 0 : index
    %0 = vector.load %arg1[%c0, %c0_0] : memref<8x32xf32, #tpu.memory_space<vmem>>, vector<8x32xf32>
    %c0_1 = arith.constant 0 : index
    %c0_2 = arith.constant 0 : index
    %1 = vector.load %arg2[%c0_1, %c0_2] : memref<8x32xf32, #tpu.memory_space<vmem>>, vector<8x32xf32>
    %c8_i32 = arith.constant 8 : i32
    %2 = arith.muli %arg0, %c8_i32 : i32
    %3 = tpu.iota {dimensions = array<i32: 0>} : vector<8x1xi32>
    %4 = vector.broadcast %2 : i32 to vector<8x1xi32>
    %5 = arith.addi %3, %4 : vector<8x1xi32>
    %c16_i32 = arith.constant 16 : i32
    %6 = vector.broadcast %c16_i32 : i32 to vector<8x1xi32>
    %7 = arith.cmpi slt, %5, %6 : vector<8x1xi32>
    %cst = arith.constant dense<0xFF800000> : vector<8xf32>
    %8 = vector.multi_reduction <maximumf>, %0, %cst [1] : vector<8x32xf32> to vector<8xf32>
    %9 = vector.shape_cast %8 : vector<8xf32> to vector<8x1xf32>
    %10 = vector.broadcast %9 : vector<8x1xf32> to vector<8x32xf32>
    %11 = arith.subf %0, %10 : vector<8x32xf32>
    %12 = math.exp %11 : vector<8x32xf32>
    %cst_3 = arith.constant dense<0.000000e+00> : vector<8xf32>
    %13 = vector.multi_reduction <add>, %12, %cst_3 [1] : vector<8x32xf32> to vector<8xf32>
    %14 = vector.shape_cast %13 : vector<8xf32> to vector<8x1xf32>
    %15 = math.log %14 : vector<8x1xf32>
    %16 = vector.broadcast %9 : vector<8x1xf32> to vector<8x32xf32>
    %17 = arith.subf %0, %16 : vector<8x32xf32>
    %18 = vector.broadcast %15 : vector<8x1xf32> to vector<8x32xf32>
    %19 = arith.subf %17, %18 : vector<8x32xf32>
    %20 = arith.mulf %19, %1 : vector<8x32xf32>
    %cst_4 = arith.constant dense<0.000000e+00> : vector<8xf32>
    %21 = vector.multi_reduction <add>, %20, %cst_4 [1] : vector<8x32xf32> to vector<8xf32>
    %22 = vector.shape_cast %21 : vector<8xf32> to vector<8x1xf32>
    %cst_5 = arith.constant 0.000000e+00 : f32
    %23 = vector.broadcast %cst_5 : f32 to vector<8x1xf32>
    %24 = arith.subf %23, %22 : vector<8x1xf32>
    %cst_6 = arith.constant 0.000000e+00 : f32
    %25 = vector.broadcast %cst_6 : f32 to vector<8x1xf32>
    %26 = arith.select %7, %24, %25 : vector<8x1xi1>, vector<8x1xf32>
    %27 = vector.shape_cast %26 : vector<8x1xf32> to vector<1x8x1xf32>
    %cst_7 = arith.constant dense<0.000000e+00> : vector<1xf32>
    %28 = vector.multi_reduction <add>, %27, %cst_7 [1, 2] : vector<1x8x1xf32> to vector<1xf32>
    %29 = vector.shape_cast %28 : vector<1xf32> to vector<1x1x1xf32>
    %30 = vector.extract %29[0, 0, 0] : f32 from vector<1x1x1xf32>
    %cst_8 = arith.constant 0.000000e+00 : f32
    %31 = vector.broadcast %cst_8 : f32 to vector<8x1xf32>
    %32 = arith.subf %31, %15 : vector<8x1xf32>
    %cst_9 = arith.constant 0.000000e+00 : f32
    %33 = vector.broadcast %cst_9 : f32 to vector<8x1xf32>
    %34 = arith.select %7, %32, %33 : vector<8x1xi1>, vector<8x1xf32>
    %35 = vector.shape_cast %34 : vector<8x1xf32> to vector<1x8x1xf32>
    %cst_10 = arith.constant dense<0.000000e+00> : vector<1xf32>
    %36 = vector.multi_reduction <add>, %35, %cst_10 [1, 2] : vector<1x8x1xf32> to vector<1xf32>
    %37 = vector.shape_cast %36 : vector<1xf32> to vector<1x1x1xf32>
    %38 = vector.extract %37[0, 0, 0] : f32 from vector<1x1x1xf32>
    %39 = tpu.iota {dimensions = array<i32: 0>} : vector<8x128xi32>
    %40 = tpu.iota {dimensions = array<i32: 1>} : vector<8x128xi32>
    %c0_i32 = arith.constant 0 : i32
    %41 = vector.broadcast %c0_i32 : i32 to vector<8x128xi32>
    %42 = arith.cmpi eq, %39, %41 : vector<8x128xi32>
    %c0_i32_11 = arith.constant 0 : i32
    %43 = vector.broadcast %c0_i32_11 : i32 to vector<8x128xi32>
    %44 = arith.cmpi eq, %40, %43 : vector<8x128xi32>
    %45 = arith.andi %42, %44 : vector<8x128xi1>
    %c0_i32_12 = arith.constant 0 : i32
    %46 = vector.broadcast %c0_i32_12 : i32 to vector<8x128xi32>
    %47 = arith.cmpi eq, %39, %46 : vector<8x128xi32>
    %c1_i32 = arith.constant 1 : i32
    %48 = vector.broadcast %c1_i32 : i32 to vector<8x128xi32>
    %49 = arith.cmpi eq, %40, %48 : vector<8x128xi32>
    %50 = arith.andi %47, %49 : vector<8x128xi1>
    %c0_i32_13 = arith.constant 0 : i32
    %51 = vector.broadcast %c0_i32_13 : i32 to vector<8x128xi32>
    %52 = arith.cmpi eq, %39, %51 : vector<8x128xi32>
    %c2_i32 = arith.constant 2 : i32
    %53 = vector.broadcast %c2_i32 : i32 to vector<8x128xi32>
    %54 = arith.cmpi eq, %40, %53 : vector<8x128xi32>
    %55 = arith.andi %52, %54 : vector<8x128xi1>
    %cst_14 = arith.constant 0.000000e+00 : f32
    %cst_15 = arith.constant 0.000000e+00 : f32
    %56 = vector.broadcast %cst_14 : f32 to vector<8x128xf32>
    %57 = vector.broadcast %cst_15 : f32 to vector<8x128xf32>
    %58 = arith.select %55, %56, %57 : vector<8x128xi1>, vector<8x128xf32>
    %59 = vector.broadcast %38 : f32 to vector<8x128xf32>
    %60 = arith.select %50, %59, %58 : vector<8x128xi1>, vector<8x128xf32>
    %61 = vector.broadcast %30 : f32 to vector<8x128xf32>
    %62 = arith.select %45, %61, %60 : vector<8x128xi1>, vector<8x128xf32>
    %c0_16 = arith.constant 0 : index
    %c0_17 = arith.constant 0 : index
    %63 = vector.load %arg3[%c0_16, %c0_17] : memref<8x128xf32, #tpu.memory_space<vmem>>, vector<8x128xf32>
    tpu.vector_store %arg3[%c0_16, %c0_17], %62 {strides = array<i32>} : memref<8x128xf32, #tpu.memory_space<vmem>>, vector<8x128xf32>,
    return
  }
  func.func @transform_0(%arg0: i32) -> (i32, i32) {
    %c0_i32 = arith.constant 0 : i32
    %c0_i32_0 = arith.constant 0 : i32
    return %arg0, %c0_i32 : i32, i32
  }
  func.func @transform_1(%arg0: i32) -> (i32, i32) {
    %c0_i32 = arith.constant 0 : i32
    %c0_i32_0 = arith.constant 0 : i32
    return %arg0, %c0_i32 : i32, i32
  }
  func.func @transform_2(%arg0: i32) -> (i32, i32) {
    %c0_i32 = arith.constant 0 : i32
    %c0_i32_0 = arith.constant 0 : i32
    return %arg0, %c0_i32 : i32, i32
  }
}

</mosaic_0001>

<llo_original>
// kernel: tpu_custom_call.1
$region0: #{tpu_custom_call.1}
  #allocation0 [shape = 'u32[]', space=smem, size = 0x4, offset = 0x4, fixed_abs, tag = 'smem constant byte address 0x4 - core index']
  #allocation1 [shape = 'u32[72,128]{1,0:T(1,128)}', space=vmem, size = 0x9000, scoped, tag = 'internal scratch']
  %s0 = inlined_call_operand.hbm [shape: f32[16,32], index: 0, kind: input, shape index: {}]
  %s1 = inlined_call_operand.hbm [shape: f32[16,32], index: 1, kind: input, shape index: {}]
  %s2 = inlined_call_operand.hbm [shape: f32[16,128], index: 2, kind: output, shape index: {}]
  %s3 = sld [smem:[#allocation0]]
  $region49: #{tpu_custom_call.1} parent=0
    _
  %s5 = ssub.s32 1, %s3
  %s6 = scalar_select 0, %s5, %s3
  $region1: #{tpu_custom_call.1} parent=0
    #allocation2 [shape = 'u8[8192]{0}', space=vmem, size = 0x2000, scoped, tag = 'input window, operand 0']
    #allocation3 [shape = 's32[2]{0}', space=sflag, size = 0x8, scoped, tag = 'scoped memory for tpu_custom_call.1']
    #allocation4 [shape = 's32[2]{0}', space=sflag, size = 0x8, scoped, tag = 'scoped memory for tpu_custom_call.1']
    #allocation5 [shape = 'u8[8192]{0}', space=vmem, size = 0x2000, scoped, tag = 'input window, operand 1']
    #allocation6 [shape = 's32[2]{0}', space=sflag, size = 0x8, scoped, tag = 'scoped memory for tpu_custom_call.1']
    #allocation7 [shape = 'u8[8192]{0}', space=vmem, size = 0x2000, scoped, tag = 'output window, operand 0']
    %7 = vsyncpa [#allocation3], 0
    %s8 = scalar_lea.sflag [#allocation3], 1
    %9 = vsyncpa %s8, 0
    %10 = vsyncpa [#allocation6], 0
    %s11 = scalar_lea.sflag [#allocation6], 1
    %12 = vsyncpa %s11, 0
    %13 = vsyncpa [#allocation4], 0
    %s14 = scalar_lea.sflag [#allocation4], 1
    %15 = vsyncpa %s14, 0
    loop: start=0, step=1, limit=4
    $region2: #{tpu_custom_call.1} parent=1 // loop_pre_header
      _
    $region3: #{tpu_custom_call.1} parent=1 // loop_header
      %s17 = sphi 0, %s21
      %p18 = scmp.ge.s32.totalorder %s17, 4
      %s27 = sphi 0, %s29
      %s30 = sphi 0, %s27
      %s31 = sphi 0, %s30
      %s47 = sphi 0, %s31
      %s53 = sphi 0, %s55
      %s56 = sphi 0, %s53
      %s57 = sphi 0, %s56
      %s73 = sphi 0, %s57
      %s79 = sphi 0, %s81
      %s82 = sphi 0, %s79
      %s83 = sphi 0, %s82
      %s99 = sphi 0, %s83
    $region4: #{tpu_custom_call.1} parent=1 // loop_header_branch
      %20 = sbr.rel (%p18) target = $region8
    $region5: #{tpu_custom_call.1} parent=1 // loop_body
      %s22 = ssub.s32 %s17, 1
      %s23 = ssub.s32 %s17, 2
      %s24 = sadd.s32 %s17, 1
      %s25 = ssub.s32 %s17, %s24
      %p26 = scmp.eq.s32.totalorder %s25, 0
      %s28 = sadd.s32 %s27, 1
      %s29 = scalar_select %p26, %s27, %s28
      %p32 = pneg %p26
      %p33 = scmp.eq.s32.totalorder %s17, 1
      %p34 = por %p32, %p33
      %p35 = scmp.ne.s32.totalorder %s27, %s30
      %p36 = scmp.eq.s32.totalorder %s17, 0
      %p37 = por %p35, %p36
      %p38 = scmp.ne.s32.totalorder %s27, %s30
      %p39 = scmp.eq.s32.totalorder %s22, 1
      %p40 = por %p38, %p39
      %p41 = scmp.ne.s32.totalorder %s30, %s31
      %p42 = scmp.eq.s32.totalorder %s22, 0
      %p43 = por %p41, %p42
      %p44 = scmp.ne.s32.totalorder %s30, %s31
      %p45 = scmp.eq.s32.totalorder %s23, 1
      %p46 = por %p44, %p45
      %p48 = scmp.ne.s32.totalorder %s31, %s47
      %p49 = scmp.eq.s32.totalorder %s23, 0
      %p50 = por %p48, %p49
      %s51 = ssub.s32 %s17, %s24
      %p52 = scmp.eq.s32.totalorder %s51, 0
      %s54 = sadd.s32 %s53, 1
      %s55 = scalar_select %p52, %s53, %s54
      %p58 = pneg %p52
      %p59 = scmp.eq.s32.totalorder %s17, 1
      %p60 = por %p58, %p59
      %p61 = scmp.ne.s32.totalorder %s53, %s56
      %p62 = scmp.eq.s32.totalorder %s17, 0
      %p63 = por %p61, %p62
      %p64 = scmp.ne.s32.totalorder %s53, %s56
      %p65 = scmp.eq.s32.totalorder %s22, 1
      %p66 = por %p64, %p65
      %p67 = scmp.ne.s32.totalorder %s56, %s57
      %p68 = scmp.eq.s32.totalorder %s22, 0
      %p69 = por %p67, %p68
      %p70 = scmp.ne.s32.totalorder %s56, %s57
      %p71 = scmp.eq.s32.totalorder %s23, 1
      %p72 = por %p70, %p71
      %p74 = scmp.ne.s32.totalorder %s57, %s73
      %p75 = scmp.eq.s32.totalorder %s23, 0
      %p76 = por %p74, %p75
      %s77 = ssub.s32 %s17, %s24
      %p78 = scmp.eq.s32.totalorder %s77, 0
      %s80 = sadd.s32 %s79, 1
      %s81 = scalar_select %p78, %s79, %s80
      %p84 = pneg %p78
      %p85 = scmp.eq.s32.totalorder %s17, 1
      %p86 = por %p84, %p85
      %p87 = scmp.ne.s32.totalorder %s79, %s82
      %p88 = scmp.eq.s32.totalorder %s17, 0
      %p89 = por %p87, %p88
      %p90 = scmp.ne.s32.totalorder %s79, %s82
      %p91 = scmp.eq.s32.totalorder %s22, 1
      %p92 = por %p90, %p91
      %p93 = scmp.ne.s32.totalorder %s82, %s83
      %p94 = scmp.eq.s32.totalorder %s22, 0
      %p95 = por %p93, %p94
      %p96 = scmp.ne.s32.totalorder %s82, %s83
      %p97 = scmp.eq.s32.totalorder %s23, 1
      %p98 = por %p96, %p97
      %p100 = scmp.ne.s32.totalorder %s83, %s99
      %p101 = scmp.eq.s32.totalorder %s23, 0
      %p102 = por %p100, %p101
      %p103 = scmp.le.s32.totalorder 1, %s17
      %p104 = scmp.lt.s32.totalorder %s17, 3
      %p105 = pnand %p103, %p104
      %p106 = pneg %p105
      // Predicated region
      $region9: #{tpu_custom_call.1} parent=5 // pred_check
        _
      $region10: #{tpu_custom_call.1} parent=5 // pred_check_branch
        %108 = sbr.rel (%p105) target = $region12
      $region11: #{tpu_custom_call.1} parent=5 // pred_region
        %s109 = ssub.s32 %s17, 1
      $region12: #{tpu_custom_call.1} parent=5 // pred_fallthru
        _
      %p110 = scmp.lt.s32.totalorder %s17, 2
      // Predicated region
      $region13: #{tpu_custom_call.1} parent=5 // pred_check
        %p111 = pneg %p110
      $region14: #{tpu_custom_call.1} parent=5 // pred_check_branch
        %113 = sbr.rel (%p111) target = $region16
      $region15: #{tpu_custom_call.1} parent=5 // pred_region
        // Predicated region
        $region17: #{tpu_custom_call.1} parent=15 // pred_check
          %p114 = pneg %p37
        $region18: #{tpu_custom_call.1} parent=15 // pred_check_branch
          %116 = sbr.rel (%p114) target = $region20
        $region19: #{tpu_custom_call.1} parent=15 // pred_region
          %s117 = sand.u32 %s27, 1
          %s118 = scalar_lea.sflag [#allocation3], %s117
          %s119 = sand.u32 %s27, 1
          %s120 = smul.addr %s119, 8
          %s121 = scalar_lea.vmem [#allocation2], %s120
          %123 = vsyncadd %s118, 0
          %s124 = smul.addr %s17, 8
          %s125 = scalar_lea.hbm %s0, %s124
          %s127 = sshll.u32 %s125, 4
          %s128 = int_to_ptr.hbm [resolvable:$true] %s127
          %s129 = sshll.u32 %s121, 4
          %s130 = int_to_ptr.vmem [resolvable:$true] %s129
          %132 = dma.hbm_to_vmem [thread:$0]  %s128, 128, %s130, %s118
        $region20: #{tpu_custom_call.1} parent=15 // pred_fallthru
          _
        // Predicated region
        $region21: #{tpu_custom_call.1} parent=15 // pred_check
          %p133 = pneg %p63
        $region22: #{tpu_custom_call.1} parent=15 // pred_check_branch
          %135 = sbr.rel (%p133) target = $region24
        $region23: #{tpu_custom_call.1} parent=15 // pred_region
          %s136 = sand.u32 %s53, 1
          %s137 = scalar_lea.sflag [#allocation6], %s136
          %s138 = sand.u32 %s53, 1
          %s139 = smul.addr %s138, 8
          %s140 = scalar_lea.vmem [#allocation5], %s139
          %142 = vsyncadd %s137, 0
          %s143 = smul.addr %s17, 8
          %s144 = scalar_lea.hbm %s1, %s143
          %s146 = sshll.u32 %s144, 4
          %s147 = int_to_ptr.hbm [resolvable:$true] %s146
          %s148 = sshll.u32 %s140, 4
          %s149 = int_to_ptr.vmem [resolvable:$true] %s148
          %151 = dma.hbm_to_vmem [thread:$0]  %s147, 128, %s149, %s137
        $region24: #{tpu_custom_call.1} parent=15 // pred_fallthru
          _
      $region16: #{tpu_custom_call.1} parent=5 // pred_fallthru
        _
      %p152 = scmp.le.s32.totalorder 1, %s17
      %p153 = scmp.lt.s32.totalorder %s17, 3
      %p154 = pnand %p152, %p153
      %p155 = pneg %p154
      // Predicated region
      $region25: #{tpu_custom_call.1} parent=5 // pred_check
        _
      $region26: #{tpu_custom_call.1} parent=5 // pred_check_branch
        %157 = sbr.rel (%p154) target = $region28
      $region27: #{tpu_custom_call.1} parent=5 // pred_region
        %s158 = ssub.s32 %s17, 1
        %s159 = sand.u32 %s30, 1
        %s160 = scalar_lea.sflag [#allocation3], %s159
        %s161 = sand.u32 %s30, 1
        %s162 = smul.addr %s161, 8
        %s163 = scalar_lea.vmem [#allocation2], %s162
        // Predicated region
        $region29: #{tpu_custom_call.1} parent=27 // pred_check
          %p164 = pneg %p43
        $region30: #{tpu_custom_call.1} parent=27 // pred_check_branch
          %166 = sbr.rel (%p164) target = $region32
        $region31: #{tpu_custom_call.1} parent=27 // pred_region
          %168 = dma.done %s160, 128
        $region32: #{tpu_custom_call.1} parent=27 // pred_fallthru
          _
        %s169 = sand.u32 %s56, 1
        %s170 = scalar_lea.sflag [#allocation6], %s169
        %s171 = sand.u32 %s56, 1
        %s172 = smul.addr %s171, 8
        %s173 = scalar_lea.vmem [#allocation5], %s172
        // Predicated region
        $region33: #{tpu_custom_call.1} parent=27 // pred_check
          %p174 = pneg %p69
        $region34: #{tpu_custom_call.1} parent=27 // pred_check_branch
          %176 = sbr.rel (%p174) target = $region36
        $region35: #{tpu_custom_call.1} parent=27 // pred_region
          %178 = dma.done %s170, 128
        $region36: #{tpu_custom_call.1} parent=27 // pred_fallthru
          _
        %s179 = sand.u32 %s30, 1
        %s180 = scalar_lea.sflag [#allocation3], %s179
        %s181 = sand.u32 %s30, 1
        %s182 = smul.addr %s181, 8
        %s183 = scalar_lea.vmem [#allocation2], %s182
        %p184 = pneg %p43
        %p185 = pneg %p40
        %s186 = sand.u32 %s56, 1
        %s187 = scalar_lea.sflag [#allocation6], %s186
        %s188 = sand.u32 %s56, 1
        %s189 = smul.addr %s188, 8
        %s190 = scalar_lea.vmem [#allocation5], %s189
        %p191 = pneg %p69
        %p192 = pneg %p66
        %p193 = pneg %p95
        %p194 = pneg %p92
        %s195 = sand.u32 %s82, 1
        %s196 = scalar_lea.sflag [#allocation4], %s195
        %s197 = sand.u32 %s82, 1
        %s198 = smul.addr %s197, 8
        %s199 = scalar_lea.vmem [#allocation7], %s198
        %v200 = vld [vmem:[%s163] sm:$0xff]
        %v201 = vld [vmem:[%s173] sm:$0xff]
        %s202 = smul.u32 %s22, 8
        %v203 = vlaneseq
        %v204 = vshrl.u32 %v203, 7
        %v205 = vstv %s202
        %v206 = vadd.s32 %v204, %v205
        %vm207 = vcmp.lt.s32.totalorder %v206, 16
        %vm208 = vcmask 261120
        %v209 = vsel %vm208, %v200, -inf
        %210 = vmax.xlane.f32.xlu0 %v209
        %v211 = vpop.xlane.xlu0 %210
        %v212 = vsub.f32 %v200, %v211
        %v213 = vmul.f32 %v212, 1.442695
        %v214 = vpow.pop %v213
        %v215 = vsel %vm208, %v214, 0.0
        %216 = vadd.xlane.f32.xlu0 %v215
        %v217 = vpop.xlane.xlu0 %216
        %v218 = vlog2.pop %v217
        %v219 = vmul.f32 %v218, 0.6931472
        %v220 = vsub.f32 %v212, %v219
        %v221 = vmul.f32 %v220, %v201
        %v222 = vsel %vm208, %v221, 0.0
        %223 = vadd.xlane.f32.xlu0 %v222
        %v224 = vpop.xlane.xlu0 %223
        %v225 = vsub.f32 0.0, %v224
        %v226 = vsel %vm207, %v225, 0.0
        %vm227 = vcmask 7168
        %v228 = vsel %vm227, %v226, 0.0
        %229 = vadd.xlane.f32.xlu0 %v228
        %v230 = vpop.xlane.xlu0 %229
        %v231 = vrot.slane %v230, 4
        %v232 = vadd.f32 %v230, %v231
        %v233 = vrot.slane %v232, 2
        %v234 = vadd.f32 %v232, %v233
        %v235 = vrot.slane %v234, 1
        %v236 = vadd.f32 %v234, %v235
        %s237 = vtos %v236
        %v238 = vsub.f32 0.0, %v219
        %v239 = vsel %vm207, %v238, 0.0
        %v240 = vsel %vm227, %v239, 0.0
        %241 = vadd.xlane.f32.xlu0 %v240
        %v242 = vpop.xlane.xlu0 %241
        %v243 = vrot.slane %v242, 4
        %v244 = vadd.f32 %v242, %v243
        %v245 = vrot.slane %v244, 2
        %v246 = vadd.f32 %v244, %v245
        %v247 = vrot.slane %v246, 1
        %v248 = vadd.f32 %v246, %v247
        %s249 = vtos %v248
        %v250 = vlaneseq
        %v251 = vand.u32 %v250, 127
        %vm252 = vcmp.eq.s32.totalorder %v204, 0
        %vm253 = vcmp.eq.s32.totalorder %v251, 0
        %vm254 = vmand %vm252, %vm253
        %vm255 = vcmp.eq.s32.totalorder %v251, 1
        %vm256 = vmand %vm252, %vm255
        %v257 = vstv %s249
        %v258 = vsel %vm256, %v257, 0.0
        %v259 = vstv %s237
        %v260 = vsel %vm254, %v259, %v258
        %261 = vst [vmem:[%s199] sm:$0xff] %v260
        %s262 = sand.u32 %s82, 1
        %s263 = scalar_lea.sflag [#allocation4], %s262
        %s264 = sand.u32 %s82, 1
        %s265 = smul.addr %s264, 8
        %s266 = scalar_lea.vmem [#allocation7], %s265
        // Predicated region
        $region37: #{tpu_custom_call.1} parent=27 // pred_check
          %p267 = pneg %p92
        $region38: #{tpu_custom_call.1} parent=27 // pred_check_branch
          %269 = sbr.rel (%p267) target = $region40
        $region39: #{tpu_custom_call.1} parent=27 // pred_region
          %271 = vsyncadd %s263, 0
          %s272 = smul.addr %s22, 8
          %s273 = scalar_lea.hbm %s2, %s272
          %s275 = sshll.u32 %s266, 4
          %s276 = int_to_ptr.vmem [resolvable:$true] %s275
          %s277 = sshll.u32 %s273, 4
          %s278 = int_to_ptr.hbm [resolvable:$true] %s277
          %280 = dma.vmem_to_hbm [thread:$0]  %s276, 128, %s278, %s263
        $region40: #{tpu_custom_call.1} parent=27 // pred_fallthru
          _
      $region28: #{tpu_custom_call.1} parent=5 // pred_fallthru
        _
      %p281 = scmp.le.s32.totalorder 2, %s17
      // Predicated region
      $region41: #{tpu_custom_call.1} parent=5 // pred_check
        %p282 = pneg %p281
      $region42: #{tpu_custom_call.1} parent=5 // pred_check_branch
        %284 = sbr.rel (%p282) target = $region44
      $region43: #{tpu_custom_call.1} parent=5 // pred_region
        %s285 = ssub.s32 %s17, 2
        // Predicated region
        $region45: #{tpu_custom_call.1} parent=43 // pred_check
          %p286 = pneg %p98
        $region46: #{tpu_custom_call.1} parent=43 // pred_check_branch
          %288 = sbr.rel (%p286) target = $region48
        $region47: #{tpu_custom_call.1} parent=43 // pred_region
          %s289 = sand.u32 %s83, 1
          %s290 = scalar_lea.sflag [#allocation4], %s289
          %s291 = sand.u32 %s83, 1
          %s292 = smul.addr %s291, 8
          %s293 = scalar_lea.vmem [#allocation7], %s292
          %295 = dma.done %s290, 128
        $region48: #{tpu_custom_call.1} parent=43 // pred_fallthru
          _
      $region44: #{tpu_custom_call.1} parent=5 // pred_fallthru
        _
    $region6: #{tpu_custom_call.1} parent=1 // loop_footer
      %s21 = sadd.s32 1, %s17
    $region7: #{tpu_custom_call.1} parent=1 // loop_footer_branch
      %16 = sbr.rel target = $region3
    $region8: #{tpu_custom_call.1} parent=1 // loop_exit
      _
    %296 = vsyncpa [#allocation3], 1
    %s297 = scalar_lea.sflag [#allocation3], 1
    %298 = vsyncpa %s297, 1
    %299 = vsyncpa [#allocation6], 1
    %s300 = scalar_lea.sflag [#allocation6], 1
    %301 = vsyncpa %s300, 1
    %302 = vsyncpa [#allocation4], 1
    %s303 = scalar_lea.sflag [#allocation4], 1
    %304 = vsyncpa %s303, 1

</llo_original>
